<compile_context>
chip_gen: v7x
topology: tpu7x:2x2x1
jax: 0.10.0
libtpu: 0.0.40
codegen_flags: <defaults>
</compile_context>

<pallas_src>
import functools

import jax
import jax.numpy as jnp
from jax.experimental import pallas as pl
from jax.experimental.pallas import tpu as pltpu

_EPS = 1e-6
_LANES = 128
_SUBLANES = 8
# ~2 MiB per input buffer -> 2 streams x 2 buffers = 8 MiB of pipelined input.
_TARGET_TILE_BYTES = 2 * 1024 * 1024
# Raised scoped-VMEM limit: covers pipelined buffers + in-kernel f32
# temporaries on v5e (16 MiB default) while staying <= v7x's 64 MiB per TC.
_VMEM_LIMIT_BYTES = 48 * 1024 * 1024


def _sigmoid_f32(x):
    # Single-transcendental sigmoid: one EUP tanh instead of exp + divide.
    return 0.5 * (jnp.tanh(0.5 * x) + 1.0)


def _cel_kernel(pred_ref, target_ref, pt_out, it_out, *, n_rows, steps_per_core):
    """Accumulate per-lane partials of (p + t) and (p * t) for one row tile.

    Rows at or beyond `n_rows` (trailing partial tile, tiles introduced by
    rounding the grid up to the parallel-core count) hold undefined data and
    are zeroed with a row mask before accumulation.
    """
    c = pl.program_id(0)      # parallel chunk (megacore shard)
    i = pl.program_id(1)      # sequential row-tile within the chunk
    tile_rows, lanes = pred_ref.shape

    @pl.when(i == 0)
    def _():
        pt_out[...] = jnp.zeros_like(pt_out)
        it_out[...] = jnp.zeros_like(it_out)

    # Unclamped global tile index: the index_map clamps the DMA to stay in
    # bounds, but the mask below uses the unclamped index so duplicated /
    # out-of-range tiles contribute exactly zero.
    gidx = c * steps_per_core + i
    rows_valid = n_rows - gidx * tile_rows   # scalar; <= 0 => fully masked

    p = _sigmoid_f32(pred_ref[...].astype(jnp.float32))
    t = target_ref[...].astype(jnp.float32)

    pt = p + t
    it = p * t

    # Single unconditional row mask; `where` select blocks NaN/garbage from the
    # undefined out-of-bounds region.
    rid = jax.lax.broadcasted_iota(jnp.int32, (tile_rows, lanes), 0)
    valid = rid < rows_valid
    pt = jnp.where(valid, pt, 0.0)
    it = jnp.where(valid, it, 0.0)

    # Reduce tile_rows -> 8 sublanes with cheap vreg-wise VPU adds; keep the
    # accumulation per-lane in f32 (better numerics than a scalar chain).
    pt = pt.reshape(tile_rows // _SUBLANES, _SUBLANES, lanes).sum(axis=0)
    it = it.reshape(tile_rows // _SUBLANES, _SUBLANES, lanes).sum(axis=0)
    pt_out[0] += pt
    it_out[0] += it


def _run_kernel(pred2d, target2d):
    """Returns (sum(p)+sum(t), sum(p*t)) over a 2-D view, as f32 scalars."""
    R, L = pred2d.shape
    itemsize = jnp.dtype(pred2d.dtype).itemsize
    lane_padded = pl.cdiv(L, _LANES) * _LANES          # VMEM lane footprint
    bytes_per_row = lane_padded * itemsize

    max_rows_by_bytes = max(
        _SUBLANES,
        (_TARGET_TILE_BYTES // bytes_per_row) // _SUBLANES * _SUBLANES)
    tile_rows = min(max_rows_by_bytes, pl.cdiv(R, _SUBLANES) * _SUBLANES)

    n_row_tiles = pl.cdiv(R, tile_rows)
    # Shard the row-tile range over 2 parallel chunks (megacore); harmless
    # (sequential) on single-TC chips.
    ncores = 2 if n_row_tiles >= 2 else 1
    steps_per_core = pl.cdiv(n_row_tiles, ncores)
    last_tile = n_row_tiles - 1

    def in_index(c, i):
        # Clamp so the DMA never starts past the array; the kernel masks the
        # duplicated tile away using the unclamped index.
        return (jnp.minimum(c * steps_per_core + i, last_tile), 0)

    in_spec = pl.BlockSpec((tile_rows, L), in_index)
    out_spec = pl.BlockSpec((1, _SUBLANES, L), lambda c, i: (c, 0, 0))

    kernel = functools.partial(_cel_kernel, n_rows=R,
                               steps_per_core=steps_per_core)

    n_elems = R * L
    cost = pl.CostEstimate(
        flops=8 * n_elems,
        transcendentals=n_elems,
        bytes_accessed=2 * n_elems * itemsize
        + 2 * ncores * _SUBLANES * L * 4)

    pt_sum, it_sum = pl.pallas_call(
        kernel,
        out_shape=(
            jax.ShapeDtypeStruct((ncores, _SUBLANES, L), jnp.float32),
            jax.ShapeDtypeStruct((ncores, _SUBLANES, L), jnp.float32),
        ),
        grid_spec=pltpu.PrefetchScalarGridSpec(
            num_scalar_prefetch=0,
            grid=(ncores, steps_per_core),
            in_specs=[in_spec, in_spec],
            out_specs=(out_spec, out_spec),
        ),
        compiler_params=pltpu.CompilerParams(
            # TODO(synk): on v7x, verify the leading axis really core-shards;
            # if plain "parallel" does not, switch it to pltpu.CORE_PARALLEL
            # (kept "parallel" here so single-TC v5e/v6e compile unchanged).
            dimension_semantics=("parallel", "arbitrary"),
            vmem_limit_bytes=_VMEM_LIMIT_BYTES),
        cost_estimate=cost,
    )(pred2d, target2d)

    return jnp.sum(pt_sum), jnp.sum(it_sum)


def cel_loss(pred: jax.Array, target: jax.Array) -> jax.Array:
    """CEL loss. pred/target: same shape (e.g. NCHW). Returns f32 scalar."""
    assert pred.shape == target.shape
    n = pred.size
    assert n > 0
    itemsize = jnp.dtype(pred.dtype).itemsize

    tail_s = jnp.float32(0.0)
    tail_i = jnp.float32(0.0)

    if n % _LANES == 0:
        # Zero-copy lane-dense view (pure bitcast reshape).
        R, L = n // _LANES, _LANES
        pred2d = pred.reshape(R, L)
        target2d = target.reshape(R, L)
    else:
        L = pred.shape[-1] if pred.ndim else 1
        lane_padded = pl.cdiv(L, _LANES) * _LANES
        if lane_padded * _SUBLANES * 4 <= _TARGET_TILE_BYTES:
            # Zero-copy view keeping the (ragged) last dim on the lanes.
            R = n // L
            pred2d = pred.reshape(R, L)
            target2d = target.reshape(R, L)
        else:
            # Rare fallback (huge ragged last dim): run the kernel on the
            # 128-lane-aligned prefix (the slice may materialize one copy)
            # and reduce the <128-element tail with plain jnp.
            pred_flat = pred.reshape(-1)
            target_flat = target.reshape(-1)
            R, L = n // _LANES, _LANES
            n_prefix = R * _LANES
            tp = _sigmoid_f32(pred_flat[n_prefix:].astype(jnp.float32))
            tt = target_flat[n_prefix:].astype(jnp.float32)
            tail_s = jnp.sum(tp) + jnp.sum(tt)
            tail_i = jnp.sum(tp * tt)
            pred2d = pred_flat[:n_prefix].reshape(R, L)
            target2d = target_flat[:n_prefix].reshape(R, L)

    pt, it = _run_kernel(pred2d, target2d)
    s = pt + tail_s            # sum(p) + sum(t)   (= denominator)
    inter = it + tail_i        # sum(p * t)
    num = s - 2.0 * inter      # = (p - inter).sum() + (t - inter).sum()
    return num / (s + jnp.float32(_EPS))


def _cel_reference(pred, target):
    p = jax.nn.sigmoid(pred.astype(jnp.float32))
    t = target.astype(jnp.float32)
    inter = p * t
    num = jnp.sum(p - inter) + jnp.sum(t - inter)
    den = jnp.sum(p) + jnp.sum(t)
    return num / (den + _EPS)


if __name__ == "__main__":
    key = jax.random.PRNGKey(0)
    k1, k2, k3, k4, k5, k6 = jax.random.split(key, 6)
    cel = jax.jit(cel_loss)

    # 1) Small NCHW case (single tile, aligned, zero-copy lane-dense view).
    pred = jax.random.normal(k1, (2, 4, 16, 16), dtype=jnp.float32)
    target = (jax.random.uniform(k2, (2, 4, 16, 16)) > 0.5).astype(jnp.float32)
    out = jax.block_until_ready(cel(pred, target))
    ref = _cel_reference(pred, target)
    assert jnp.allclose(out, ref, rtol=2e-5, atol=1e-6), (out, ref)

    # 2) Multi-tile aligned case: 2-chunk parallel axis, a partial trailing
    #    tile AND a fully-masked grid-rounding tile (clamped DMA index).
    pred2 = jax.random.normal(k3, (4, 8, 256, 181), dtype=jnp.float32)
    target2 = (jax.random.uniform(k4, (4, 8, 256, 181)) > 0.5).astype(jnp.float32)
    out2 = jax.block_until_ready(cel(pred2, target2))
    ref2 = _cel_reference(pred2, target2)
    assert jnp.allclose(out2, ref2, rtol=2e-5, atol=1e-6), (out2, ref2)

    # 3) Ragged total size (n % 128 != 0): zero-copy (rows, W) view, bf16 wire.
    pred3 = jax.random.normal(k5, (2, 4, 251, 181), dtype=jnp.bfloat16)
    target3 = (jax.random.uniform(k6, (2, 4, 251, 181)) > 0.5).astype(jnp.bfloat16)
    out3 = jax.block_until_ready(cel(pred3, target3))
    ref3 = _cel_reference(pred3, target3)
    assert jnp.allclose(out3, ref3, rtol=1e-4, atol=1e-5), (out3, ref3)

    print("KERNEL_OK")
</pallas_src>

<mosaic_0001>
module attributes {stable_mosaic.version = 11 : i64} {
  func.func @_cel_kernel(%arg0: i32, %arg1: i32, %arg2: memref<16x128xf32, #tpu.memory_space<vmem>>, %arg3: memref<16x128xf32, #tpu.memory_space<vmem>>, %arg4: memref<1x8x128xf32, #tpu.memory_space<vmem>>, %arg5: memref<1x8x128xf32, #tpu.memory_space<vmem>>) attributes {dimension_semantics = [#tpu.dimension_semantics<parallel>, #tpu.dimension_semantics<arbitrary>], iteration_bounds = array<i64: 1, 1>, scalar_prefetch = 0 : i64, scratch_operands = 0 : i64, tpu.core_type = #tpu.core_type<tc>, window_params = [{transform_indices = @transform_0, window_bounds = array<i64: 16, 128>}, {transform_indices = @transform_1, window_bounds = array<i64: 16, 128>}, {transform_indices = @transform_2, window_bounds = array<i64: 1, 8, 128>}, {transform_indices = @transform_3, window_bounds = array<i64: 1, 8, 128>}]} {
    %c0_i32 = arith.constant 0 : i32
    %0 = arith.cmpi eq, %arg1, %c0_i32 : i32
    %1 = arith.extui %0 : i1 to i32
    %c0_i32_0 = arith.constant 0 : i32
    %2 = arith.cmpi ne, %1, %c0_i32_0 : i32
    scf.if %2 {
      %cst_23 = arith.constant 0.000000e+00 : f32
      %41 = vector.broadcast %cst_23 : f32 to vector<1x8x128xf32>
      %c0_24 = arith.constant 0 : index
      %c0_25 = arith.constant 0 : index
      %c0_26 = arith.constant 0 : index
      %42 = vector.load %arg4[%c0_24, %c0_25, %c0_26] : memref<1x8x128xf32, #tpu.memory_space<vmem>>, vector<1x8x128xf32>
      tpu.vector_store %arg4[%c0_24, %c0_25, %c0_26], %41 {strides = array<i32>} : memref<1x8x128xf32, #tpu.memory_space<vmem>>, vector<1x8x128xf32>,
      %cst_27 = arith.constant 0.000000e+00 : f32
      %43 = vector.broadcast %cst_27 : f32 to vector<1x8x128xf32>
      %c0_28 = arith.constant 0 : index
      %c0_29 = arith.constant 0 : index
      %c0_30 = arith.constant 0 : index
      %44 = vector.load %arg5[%c0_28, %c0_29, %c0_30] : memref<1x8x128xf32, #tpu.memory_space<vmem>>, vector<1x8x128xf32>
      tpu.vector_store %arg5[%c0_28, %c0_29, %c0_30], %43 {strides = array<i32>} : memref<1x8x128xf32, #tpu.memory_space<vmem>>, vector<1x8x128xf32>,
    } else {
    }
    %c1_i32 = arith.constant 1 : i32
    %3 = arith.muli %arg0, %c1_i32 : i32
    %4 = arith.addi %3, %arg1 : i32
    %c16_i32 = arith.constant 16 : i32
    %5 = arith.muli %4, %c16_i32 : i32
    %c16_i32_1 = arith.constant 16 : i32
    %6 = arith.subi %c16_i32_1, %5 : i32
    %c0 = arith.constant 0 : index
    %c0_2 = arith.constant 0 : index
    %7 = vector.load %arg2[%c0, %c0_2] : memref<16x128xf32, #tpu.memory_space<vmem>>, vector<16x128xf32>
    %cst = arith.constant 5.000000e-01 : f32
    %8 = vector.broadcast %cst : f32 to vector<16x128xf32>
    %9 = arith.mulf %8, %7 : vector<16x128xf32>
    %10 = math.tanh %9 : vector<16x128xf32>
    %cst_3 = arith.constant 1.000000e+00 : f32
    %11 = vector.broadcast %cst_3 : f32 to vector<16x128xf32>
    %12 = arith.addf %10, %11 : vector<16x128xf32>
    %cst_4 = arith.constant 5.000000e-01 : f32
    %13 = vector.broadcast %cst_4 : f32 to vector<16x128xf32>
    %14 = arith.mulf %13, %12 : vector<16x128xf32>
    %c0_5 = arith.constant 0 : index
    %c0_6 = arith.constant 0 : index
    %15 = vector.load %arg3[%c0_5, %c0_6] : memref<16x128xf32, #tpu.memory_space<vmem>>, vector<16x128xf32>
    %16 = arith.addf %14, %15 : vector<16x128xf32>
    %17 = arith.mulf %14, %15 : vector<16x128xf32>
    %18 = tpu.iota {dimensions = array<i32: 0>} : vector<16x128xi32>
    %19 = vector.broadcast %6 : i32 to vector<16x128xi32>
    %20 = arith.cmpi slt, %18, %19 : vector<16x128xi32>
    %cst_7 = arith.constant 0.000000e+00 : f32
    %21 = vector.broadcast %cst_7 : f32 to vector<16x128xf32>
    %22 = arith.select %20, %16, %21 : vector<16x128xi1>, vector<16x128xf32>
    %cst_8 = arith.constant 0.000000e+00 : f32
    %23 = vector.broadcast %cst_8 : f32 to vector<16x128xf32>
    %24 = arith.select %20, %17, %23 : vector<16x128xi1>, vector<16x128xf32>
    %25 = vector.shape_cast %22 : vector<16x128xf32> to vector<2x8x128xf32>
    %cst_9 = arith.constant dense<0.000000e+00> : vector<8x128xf32>
    %26 = vector.multi_reduction <add>, %25, %cst_9 [0] : vector<2x8x128xf32> to vector<8x128xf32>
    %27 = vector.shape_cast %24 : vector<16x128xf32> to vector<2x8x128xf32>
    %cst_10 = arith.constant dense<0.000000e+00> : vector<8x128xf32>
    %28 = vector.multi_reduction <add>, %27, %cst_10 [0] : vector<2x8x128xf32> to vector<8x128xf32>
    %c0_11 = arith.constant 0 : index
    %c0_12 = arith.constant 0 : index
    %c0_13 = arith.constant 0 : index
    %29 = vector.load %arg4[%c0_11, %c0_12, %c0_13] : memref<1x8x128xf32, #tpu.memory_space<vmem>>, vector<1x8x128xf32>
    %30 = vector.shape_cast %29 : vector<1x8x128xf32> to vector<8x128xf32>
    %31 = arith.addf %30, %26 : vector<8x128xf32>
    %c0_14 = arith.constant 0 : index
    %c0_15 = arith.constant 0 : index
    %c0_16 = arith.constant 0 : index
    %32 = vector.load %arg4[%c0_14, %c0_15, %c0_16] : memref<1x8x128xf32, #tpu.memory_space<vmem>>, vector<1x8x128xf32>
    %33 = vector.shape_cast %32 : vector<1x8x128xf32> to vector<8x128xf32>
    %34 = vector.shape_cast %31 : vector<8x128xf32> to vector<1x8x128xf32>
    tpu.vector_store %arg4[%c0_14, %c0_15, %c0_16], %34 {strides = array<i32>} : memref<1x8x128xf32, #tpu.memory_space<vmem>>, vector<1x8x128xf32>,
    %c0_17 = arith.constant 0 : index
    %c0_18 = arith.constant 0 : index
    %c0_19 = arith.constant 0 : index
    %35 = vector.load %arg5[%c0_17, %c0_18, %c0_19] : memref<1x8x128xf32, #tpu.memory_space<vmem>>, vector<1x8x128xf32>
    %36 = vector.shape_cast %35 : vector<1x8x128xf32> to vector<8x128xf32>
    %37 = arith.addf %36, %28 : vector<8x128xf32>
    %c0_20 = arith.constant 0 : index
    %c0_21 = arith.constant 0 : index
    %c0_22 = arith.constant 0 : index
    %38 = vector.load %arg5[%c0_20, %c0_21, %c0_22] : memref<1x8x128xf32, #tpu.memory_space<vmem>>, vector<1x8x128xf32>
    %39 = vector.shape_cast %38 : vector<1x8x128xf32> to vector<8x128xf32>
    %40 = vector.shape_cast %37 : vector<8x128xf32> to vector<1x8x128xf32>
    tpu.vector_store %arg5[%c0_20, %c0_21, %c0_22], %40 {strides = array<i32>} : memref<1x8x128xf32, #tpu.memory_space<vmem>>, vector<1x8x128xf32>,
    return
  }
  func.func @transform_0(%arg0: i32, %arg1: i32) -> (i32, i32) {
    %c1_i32 = arith.constant 1 : i32
    %0 = arith.muli %arg0, %c1_i32 : i32
    %1 = arith.addi %0, %arg1 : i32
    %c0_i32 = arith.constant 0 : i32
    %2 = arith.minsi %1, %c0_i32 : i32
    %c0_i32_0 = arith.constant 0 : i32
    %c0_i32_1 = arith.constant 0 : i32
    return %2, %c0_i32_0 : i32, i32
  }
  func.func @transform_1(%arg0: i32, %arg1: i32) -> (i32, i32) {
    %c1_i32 = arith.constant 1 : i32
    %0 = arith.muli %arg0, %c1_i32 : i32
    %1 = arith.addi %0, %arg1 : i32
    %c0_i32 = arith.constant 0 : i32
    %2 = arith.minsi %1, %c0_i32 : i32
    %c0_i32_0 = arith.constant 0 : i32
    %c0_i32_1 = arith.constant 0 : i32
    return %2, %c0_i32_0 : i32, i32
  }
  func.func @transform_2(%arg0: i32, %arg1: i32) -> (i32, i32, i32) {
    %c0_i32 = arith.constant 0 : i32
    %c0_i32_0 = arith.constant 0 : i32
    %c0_i32_1 = arith.constant 0 : i32
    return %arg0, %c0_i32, %c0_i32_0 : i32, i32, i32
  }
  func.func @transform_3(%arg0: i32, %arg1: i32) -> (i32, i32, i32) {
    %c0_i32 = arith.constant 0 : i32
    %c0_i32_0 = arith.constant 0 : i32
    %c0_i32_1 = arith.constant 0 : i32
    return %arg0, %c0_i32, %c0_i32_0 : i32, i32, i32
  }
}

</mosaic_0001>

<llo_original>
// kernel: cel_loss.1
$region0: #{cel_loss.1}
  #allocation0 [shape = 'u32[]', space=smem, size = 0x4, offset = 0x4, fixed_abs, tag = 'smem constant byte address 0x4 - core index']
  #allocation1 [shape = 'u32[144,128]{1,0:T(1,128)}', space=vmem, size = 0x12000, scoped, tag = 'internal scratch']
  %s0 = inlined_call_operand.vmem [shape: f32[16,128], index: 0, kind: input, shape index: {}]
  %s1 = inlined_call_operand.vmem [shape: f32[16,128], index: 1, kind: input, shape index: {}]
  %s2 = inlined_call_operand.vmem [shape: f32[1,8,128], index: 2, kind: output, shape index: {0}]
  %s3 = inlined_call_operand.vmem [shape: f32[1,8,128], index: 3, kind: output, shape index: {1}]
  %4 = xla_tuple %s2, %s3
  %s5 = sld [smem:[#allocation0]]
  $region30: #{cel_loss.1} parent=0
    _
  %s7 = ssub.s32 1, %s5
  %s8 = scalar_select 0, %s7, %s5
  // Predicated region
  $region2: #{cel_loss.1} parent=0 // pred_check
    _
  $region3: #{cel_loss.1} parent=0 // pred_check_branch
    %10 = sbr.rel (0) target = $region5
  $region4: #{cel_loss.1} parent=0 // pred_region
    %s11 = sadd.s32 0, 0
    %p12 = scmp.lt.s32.totalorder %s11, 0
    %s13 = scalar_select %p12, %s11, 0
    %s14 = smul.u32 2, %s13
    %p15 = scmp.lt.s32.totalorder %s14, 1
    %s16 = scalar_select %p15, %s14, 1
    %s17 = smul.addr %s16, 8
    %s18 = scalar_lea.vmem %s0, %s17
    %s19 = sadd.s32 0, 0
    %p20 = scmp.lt.s32.totalorder %s19, 0
    %s21 = scalar_select %p20, %s19, 0
    %s22 = smul.u32 2, %s21
  $region5: #{cel_loss.1} parent=0 // pred_fallthru
    _
  // Predicated region
  $region6: #{cel_loss.1} parent=0 // pred_check
    _
  $region7: #{cel_loss.1} parent=0 // pred_check_branch
    %24 = sbr.rel (0) target = $region9
  $region8: #{cel_loss.1} parent=0 // pred_region
    %s25 = sadd.s32 0, 0
    %p26 = scmp.lt.s32.totalorder %s25, 0
    %s27 = scalar_select %p26, %s25, 0
    %s28 = smul.u32 2, %s27
    %p29 = scmp.lt.s32.totalorder %s28, 1
    %s30 = scalar_select %p29, %s28, 1
    %s31 = smul.addr %s30, 8
    %s32 = scalar_lea.vmem %s1, %s31
    %s33 = sadd.s32 0, 0
    %p34 = scmp.lt.s32.totalorder %s33, 0
    %s35 = scalar_select %p34, %s33, 0
    %s36 = smul.u32 2, %s35
  $region9: #{cel_loss.1} parent=0 // pred_fallthru
    _
  %s37 = sadd.s32 0, 0
  %p38 = scmp.lt.s32.totalorder %s37, 0
  %s39 = scalar_select %p38, %s37, 0
  %s40 = smul.u32 2, %s39
  %p41 = scmp.lt.s32.totalorder %s40, 1
  %s42 = scalar_select %p41, %s40, 1
  %s43 = smul.addr %s42, 8
  %s44 = scalar_lea.vmem %s0, %s43
  %s45 = sadd.s32 0, 0
  %p46 = scmp.lt.s32.totalorder %s45, 0
  %s47 = scalar_select %p46, %s45, 0
  %s48 = smul.u32 2, %s47
  %p49 = scmp.lt.s32.totalorder %s48, 1
  %s50 = scalar_select %p49, %s48, 1
  %s51 = smul.addr %s50, 8
  %s52 = scalar_lea.vmem %s1, %s51
  %s53 = sadd.s32 0, 0
  %p54 = scmp.lt.s32.totalorder %s53, 0
  %s55 = scalar_select %p54, %s53, 0
  %s56 = smul.u32 2, %s55
  %p57 = scmp.lt.s32.totalorder %s56, 1
  %s58 = scalar_select %p57, %s56, 1
  %s59 = smul.addr %s58, 8
  %s60 = scalar_lea.vmem %s0, %s59
  %s61 = sadd.s32 0, 0
  %p62 = scmp.lt.s32.totalorder %s61, 0
  %s63 = scalar_select %p62, %s61, 0
  %s64 = smul.u32 2, %s63
  %s65 = sadd.s32 0, 0
  %p66 = scmp.lt.s32.totalorder %s65, 0
  %s67 = scalar_select %p66, %s65, 0
  %s68 = smul.u32 2, %s67
  %p69 = scmp.lt.s32.totalorder %s68, 1
  %s70 = scalar_select %p69, %s68, 1
  %s71 = smul.addr %s70, 8
  %s72 = scalar_lea.vmem %s1, %s71
  %s73 = sadd.s32 0, 0
  %p74 = scmp.lt.s32.totalorder %s73, 0
  %s75 = scalar_select %p74, %s73, 0
  %s76 = smul.u32 2, %s75
  %p77 = scmp.eq.s32.totalorder 0, 0
  // Predicated region
  $region10: #{cel_loss.1} parent=0 // pred_check
    %p78 = pneg %p77
  $region11: #{cel_loss.1} parent=0 // pred_check_branch
    %80 = sbr.rel (%p78) target = $region13
  $region12: #{cel_loss.1} parent=0 // pred_region
    %81 = vst [vmem:[%s2] sm:$0xff] 0.0
    %82 = vst [vmem:[%s3] sm:$0xff] 0.0
  $region13: #{cel_loss.1} parent=0 // pred_fallthru
    _
  %s83 = sadd.s32 0, 0
  %s84 = smul.u32 %s83, 16
  %s85 = ssub.s32 16, %s84
  %v86 = vld [vmem:[%s60] sm:$0xff]
  %v87 = vld [vmem:[%s60 + $0x8] sm:$0xff]
  %v88 = vmul.f32 %v86, 0.5
  %v89 = vmul.f32 %v87, 0.5
  %v90 = vtanh.pop %v88
  %v91 = vtanh.pop %v89
  %v92 = vadd.f32 %v90, 1.0
  %v93 = vadd.f32 %v91, 1.0
  %v94 = vmul.f32 %v92, 0.5
  %v95 = vmul.f32 %v93, 0.5
  %v96 = vld [vmem:[%s72] sm:$0xff]
  %v97 = vld [vmem:[%s72 + $0x8] sm:$0xff]
  %v98 = vadd.f32 %v94, %v96
  %v99 = vadd.f32 %v95, %v97
  %v100 = vmul.f32 %v94, %v96
  %v101 = vmul.f32 %v95, %v97
  %v102 = vlaneseq
  %v103 = vshrl.u32 %v102, 7
  %v104 = vadd.s32 %v103, 8
  %v105 = vstv %s85
  %vm106 = vcmp.lt.s32.totalorder %v103, %v105
  %vm107 = vcmp.lt.s32.totalorder %v104, %v105
  %v108 = vsel %vm106, %v98, 0.0
  %v109 = vsel %vm107, %v99, 0.0
  %v110 = vsel %vm106, %v100, 0.0
  %v111 = vsel %vm107, %v101, 0.0
  %v112 = vadd.f32 %v108, %v109
  %v113 = vadd.f32 %v110, %v111
  %v114 = vld [vmem:[%s2] sm:$0xff]
  %v115 = vadd.f32 %v114, %v112
  %116 = vst [vmem:[%s2] sm:$0xff] %v115
  %v117 = vld [vmem:[%s3] sm:$0xff]
  %v118 = vadd.f32 %v117, %v113
  %119 = vst [vmem:[%s3] sm:$0xff] %v118
  // Predicated region
  $region14: #{cel_loss.1} parent=0 // pred_check
    _
  $region15: #{cel_loss.1} parent=0 // pred_check_branch
    %121 = sbr.rel (0) target = $region17
  $region16: #{cel_loss.1} parent=0 // pred_region
    _
  $region17: #{cel_loss.1} parent=0 // pred_fallthru
    _
  // Predicated region
  $region18: #{cel_loss.1} parent=0 // pred_check
    _
  $region19: #{cel_loss.1} parent=0 // pred_check_branch
    %123 = sbr.rel (0) target = $region21
  $region20: #{cel_loss.1} parent=0 // pred_region
    _
  $region21: #{cel_loss.1} parent=0 // pred_fallthru
    _
  // Predicated region
  $region22: #{cel_loss.1} parent=0 // pred_check
    _
  $region23: #{cel_loss.1} parent=0 // pred_check_branch
    %125 = sbr.rel (0) target = $region25
  $region24: #{cel_loss.1} parent=0 // pred_region
    _
  $region25: #{cel_loss.1} parent=0 // pred_fallthru
    _
  // Predicated region
  $region26: #{cel_loss.1} parent=0 // pred_check
    _
  $region27: #{cel_loss.1} parent=0 // pred_check_branch
    %127 = sbr.rel (0) target = $region29
  $region28: #{cel_loss.1} parent=0 // pred_region
    _
  $region29: #{cel_loss.1} parent=0 // pred_fallthru
    _

</llo_original>
